<compile_context>
chip_gen: v7x
topology: tpu7x:2x2x1
jax: 0.10.0
libtpu: 0.0.40
codegen_flags: <defaults>
</compile_context>

<pallas_src>
import jax
import jax.numpy as jnp
from jax.experimental import pallas as pl
from jax.experimental.pallas import tpu as pltpu


def feedforward_kernel(x_ref, seg_ref, w1_ref, b1_ref, w2_ref, b2_ref,
                       w3_ref, b3_ref, invc_ref, out_ref):
    i = pl.program_id(0)

    # P3: zero the resident lane-dense accumulator on the first N-tile.
    @pl.when(i == 0)
    def _init():
        out_ref[...] = jnp.zeros_like(out_ref)

    x = x_ref[...]                                   # [TN, 2]

    # fc1 (K=2) on the VPU: two broadcast mul-adds instead of a K=2 MXU matmul.
    w1 = w1_ref[...]                                 # [2, H2]
    h1 = x[:, 0:1] * w1[0:1, :] + x[:, 1:2] * w1[1:2, :] + b1_ref[...]
    h1 = jnp.maximum(h1, 0.0)                        # [TN, H2]

    # fc2 on the MXU (the only matmul worth the systolic array).
    h2 = jnp.dot(h1, w2_ref[...], preferred_element_type=jnp.float32) + b2_ref[...]
    h2 = jnp.maximum(h2, 0.0)                        # [TN, H4]

    # fc3 (out_dim=1) off the MXU: elementwise multiply by w3 row + lane reduce.
    h3 = jnp.sum(h2 * w3_ref[...], axis=-1, keepdims=True) + b3_ref[...]
    h3 = jnp.maximum(h3, 0.0)                        # [TN, 1]

    # Segment mask built in-kernel (no dense one-hot DMA'd from HBM).
    tn = seg_ref.shape[0]
    g_pad = out_ref.shape[1]
    gids = jax.lax.broadcasted_iota(jnp.int32, (tn, g_pad), 1)
    mask = (seg_ref[...] == gids).astype(jnp.float32)    # [TN, G_pad]

    # Segment partial sums: lane-dense [1, G_pad]; accumulate into the
    # VMEM-resident output (padded nodes carry seg=-1 -> all-zero mask rows).
    out_ref[...] += jnp.sum(h3 * mask, axis=0, keepdims=True)

    # Finalize: multiply by precomputed reciprocal counts (mean pool).
    @pl.when(i == pl.num_programs(0) - 1)
    def _finalize():
        out_ref[...] = out_ref[...] * invc_ref[...]


def feedforward_forward(x, batch, params, num_graphs, *, tile_n=128):
    """x: [N, 2] float32; batch: [N] int32 graph ids in [0, num_graphs)."""
    N = x.shape[0]
    w1, b1, w2, b2, w3, b3 = params
    H2 = w1.shape[1]
    H4 = w2.shape[1]

    # Lane-dense output width and node-tile padding.
    G_pad = int(pl.cdiv(num_graphs, 128)) * 128
    n_tiles = int(pl.cdiv(N, tile_n))
    N_pad = n_tiles * tile_n

    x_pad = jnp.pad(x.astype(jnp.float32), ((0, N_pad - N), (0, 0)))
    seg = jnp.pad(batch.astype(jnp.int32), (0, N_pad - N),
                  constant_values=-1).reshape(N_pad, 1)

    # Precompute lane-dense reciprocal counts [1, G_pad] (empty graphs -> 0).
    counts = jnp.zeros((G_pad,), jnp.float32).at[batch].add(1.0)
    inv_counts = jnp.where(counts > 0, 1.0 / jnp.maximum(counts, 1.0),
                           0.0).reshape(1, G_pad)

    w3_row = w3.reshape(1, H4)          # [H4,1] -> [1,H4] row for the VPU fc3
    b3_2d = b3.reshape(1, 1)

    const = lambda i: (0, 0)            # weights / scalars stay resident
    out = pl.pallas_call(
        feedforward_kernel,
        out_shape=jax.ShapeDtypeStruct((1, G_pad), jnp.float32),
        grid=(n_tiles,),
        in_specs=[
            pl.BlockSpec((tile_n, 2), lambda i: (i, 0)),   # x tile
            pl.BlockSpec((tile_n, 1), lambda i: (i, 0)),   # batch ids tile
            pl.BlockSpec((2, H2), const),                  # w1
            pl.BlockSpec((1, H2), const),                  # b1
            pl.BlockSpec((H2, H4), const),                 # w2
            pl.BlockSpec((1, H4), const),                  # b2
            pl.BlockSpec((1, H4), const),                  # w3 (row)
            pl.BlockSpec((1, 1), const),                   # b3
            pl.BlockSpec((1, G_pad), const),               # inv counts
        ],
        out_specs=pl.BlockSpec((1, G_pad), const),
        compiler_params=pltpu.CompilerParams(
            dimension_semantics=("arbitrary",),            # reduction over N-tiles
        ),
    )(x_pad, seg, w1, b1, w2, b2, w3_row, b3_2d, inv_counts)

    return out[0, :num_graphs]                             # [G]


def init_params(key, hidden_size):
    """Deterministic init matching torch.nn.Linear shapes (stored transposed: [in, out])."""
    h2, h4 = hidden_size // 2, hidden_size // 4
    ks = jax.random.split(key, 6)

    def lin(kw, kb, fan_in, fan_out):
        bound = 1.0 / jnp.sqrt(fan_in)
        w = jax.random.uniform(kw, (fan_in, fan_out), jnp.float32, -bound, bound)
        b = jax.random.uniform(kb, (1, fan_out), jnp.float32, -bound, bound)
        return w, b

    w1, b1 = lin(ks[0], ks[1], 2, h2)
    w2, b2 = lin(ks[2], ks[3], h2, h4)
    w3, b3 = lin(ks[4], ks[5], h4, 1)
    return (w1, b1, w2, b2, w3, b3)


if __name__ == "__main__":
    key = jax.random.PRNGKey(0)
    k_x, k_b, k_p = jax.random.split(key, 3)

    hidden_size = 32
    N = 300           # total nodes across graphs (exercises the N-tile grid)
    num_graphs = 5

    x = jax.random.normal(k_x, (N, 2), dtype=jnp.float32)
    batch = jnp.sort(jax.random.randint(k_b, (N,), 0, num_graphs)).astype(jnp.int32)

    params = init_params(k_p, hidden_size)

    out = feedforward_forward(x, batch, params, num_graphs)
    jax.block_until_ready(out)

    # Pure-JAX reference (full-precision matmuls).
    w1, b1, w2, b2, w3, b3 = params
    dotp = lambda a, b: jnp.dot(a, b, precision=jax.lax.Precision.HIGHEST)
    h1 = jnp.maximum(dotp(x, w1) + b1, 0.0)
    h2 = jnp.maximum(dotp(h1, w2) + b2, 0.0)
    h3 = jnp.maximum(dotp(h2, w3) + b3, 0.0)[:, 0]
    seg_sum = jnp.zeros((num_graphs,), jnp.float32).at[batch].add(h3)
    seg_cnt = jnp.zeros((num_graphs,), jnp.float32).at[batch].add(1.0)
    ref = seg_sum / jnp.maximum(seg_cnt, 1.0)

    assert out.shape == (num_graphs,)
    assert jnp.allclose(out, ref, atol=1e-4, rtol=1e-4), (out, ref)
    print("KERNEL_OK")
</pallas_src>

<mosaic_0001>
module attributes {stable_mosaic.version = 11 : i64} {
  func.func @feedforward_kernel(%arg0: i32, %arg1: memref<128x2xf32, #tpu.memory_space<vmem>>, %arg2: memref<128x1xi32, #tpu.memory_space<vmem>>, %arg3: memref<2x16xf32, #tpu.memory_space<vmem>>, %arg4: memref<1x16xf32, #tpu.memory_space<vmem>>, %arg5: memref<16x8xf32, #tpu.memory_space<vmem>>, %arg6: memref<1x8xf32, #tpu.memory_space<vmem>>, %arg7: memref<1x8xf32, #tpu.memory_space<vmem>>, %arg8: memref<1x1xf32, #tpu.memory_space<vmem>>, %arg9: memref<1x128xf32, #tpu.memory_space<vmem>>, %arg10: memref<1x128xf32, #tpu.memory_space<vmem>>) attributes {dimension_semantics = [#tpu.dimension_semantics<arbitrary>], iteration_bounds = array<i64: 3>, scalar_prefetch = 0 : i64, scratch_operands = 0 : i64, tpu.core_type = #tpu.core_type<tc>, window_params = [{transform_indices = @transform_0, window_bounds = array<i64: 128, 2>}, {transform_indices = @transform_1, window_bounds = array<i64: 128, 1>}, {pipeline_mode = #tpu.pipeline_mode<synchronous>, transform_indices = @transform_2, window_bounds = array<i64: 2, 16>}, {pipeline_mode = #tpu.pipeline_mode<synchronous>, transform_indices = @transform_3, window_bounds = array<i64: 1, 16>}, {pipeline_mode = #tpu.pipeline_mode<synchronous>, transform_indices = @transform_4, window_bounds = array<i64: 16, 8>}, {pipeline_mode = #tpu.pipeline_mode<synchronous>, transform_indices = @transform_5, window_bounds = array<i64: 1, 8>}, {pipeline_mode = #tpu.pipeline_mode<synchronous>, transform_indices = @transform_6, window_bounds = array<i64: 1, 8>}, {pipeline_mode = #tpu.pipeline_mode<synchronous>, transform_indices = @transform_7, window_bounds = array<i64: 1, 1>}, {pipeline_mode = #tpu.pipeline_mode<synchronous>, transform_indices = @transform_8, window_bounds = array<i64: 1, 128>}, {pipeline_mode = #tpu.pipeline_mode<synchronous>, transform_indices = @transform_9, window_bounds = array<i64: 1, 128>}]} {
    %c0_i32 = arith.constant 0 : i32
    %0 = arith.cmpi eq, %arg0, %c0_i32 : i32
    %1 = arith.extui %0 : i1 to i32
    %c0_i32_0 = arith.constant 0 : i32
    %2 = arith.cmpi ne, %1, %c0_i32_0 : i32
    scf.if %2 {
      %cst_26 = arith.constant 0.000000e+00 : f32
      %54 = vector.broadcast %cst_26 : f32 to vector<1x128xf32>
      %c0_27 = arith.constant 0 : index
      %c0_28 = arith.constant 0 : index
      %55 = vector.load %arg10[%c0_27, %c0_28] : memref<1x128xf32, #tpu.memory_space<vmem>>, vector<1x128xf32>
      tpu.vector_store %arg10[%c0_27, %c0_28], %54 {strides = array<i32>} : memref<1x128xf32, #tpu.memory_space<vmem>>, vector<1x128xf32>,
    } else {
    }
    %c0 = arith.constant 0 : index
    %c0_1 = arith.constant 0 : index
    %3 = vector.load %arg1[%c0, %c0_1] : memref<128x2xf32, #tpu.memory_space<vmem>>, vector<128x2xf32>
    %c0_2 = arith.constant 0 : index
    %c0_3 = arith.constant 0 : index
    %4 = vector.load %arg3[%c0_2, %c0_3] : memref<2x16xf32, #tpu.memory_space<vmem>>, vector<2x16xf32>
    %5 = vector.extract_strided_slice %3 {offsets = [0, 0], sizes = [128, 1], strides = [1, 1]} : vector<128x2xf32> to vector<128x1xf32>
    %6 = vector.extract_strided_slice %4 {offsets = [0, 0], sizes = [1, 16], strides = [1, 1]} : vector<2x16xf32> to vector<1x16xf32>
    %7 = vector.broadcast %5 : vector<128x1xf32> to vector<128x16xf32>
    %8 = vector.broadcast %6 : vector<1x16xf32> to vector<128x16xf32>
    %9 = arith.mulf %7, %8 : vector<128x16xf32>
    %10 = vector.extract_strided_slice %3 {offsets = [0, 1], sizes = [128, 1], strides = [1, 1]} : vector<128x2xf32> to vector<128x1xf32>
    %11 = vector.extract_strided_slice %4 {offsets = [1, 0], sizes = [1, 16], strides = [1, 1]} : vector<2x16xf32> to vector<1x16xf32>
    %12 = vector.broadcast %10 : vector<128x1xf32> to vector<128x16xf32>
    %13 = vector.broadcast %11 : vector<1x16xf32> to vector<128x16xf32>
    %14 = arith.mulf %12, %13 : vector<128x16xf32>
    %15 = arith.addf %9, %14 : vector<128x16xf32>
    %c0_4 = arith.constant 0 : index
    %c0_5 = arith.constant 0 : index
    %16 = vector.load %arg4[%c0_4, %c0_5] : memref<1x16xf32, #tpu.memory_space<vmem>>, vector<1x16xf32>
    %17 = vector.broadcast %16 : vector<1x16xf32> to vector<128x16xf32>
    %18 = arith.addf %15, %17 : vector<128x16xf32>
    %cst = arith.constant 0.000000e+00 : f32
    %19 = vector.broadcast %cst : f32 to vector<128x16xf32>
    %20 = arith.maximumf %18, %19 : vector<128x16xf32>
    %c0_6 = arith.constant 0 : index
    %c0_7 = arith.constant 0 : index
    %21 = vector.load %arg5[%c0_6, %c0_7] : memref<16x8xf32, #tpu.memory_space<vmem>>, vector<16x8xf32>
    %cst_8 = arith.constant dense<0.000000e+00> : vector<128x8xf32>
    %22 = tpu.matmul %20, %21, %cst_8 {dimension_numbers = #tpu.dot_dimension_numbers<[1], [0], [0], [1], [0, 0, 1, 1], [], []>} : vector<128x16xf32>, vector<16x8xf32>, vector<128x8xf32> -> vector<128x8xf32>
    %c0_9 = arith.constant 0 : index
    %c0_10 = arith.constant 0 : index
    %23 = vector.load %arg6[%c0_9, %c0_10] : memref<1x8xf32, #tpu.memory_space<vmem>>, vector<1x8xf32>
    %24 = vector.broadcast %23 : vector<1x8xf32> to vector<128x8xf32>
    %25 = arith.addf %22, %24 : vector<128x8xf32>
    %cst_11 = arith.constant 0.000000e+00 : f32
    %26 = vector.broadcast %cst_11 : f32 to vector<128x8xf32>
    %27 = arith.maximumf %25, %26 : vector<128x8xf32>
    %c0_12 = arith.constant 0 : index
    %c0_13 = arith.constant 0 : index
    %28 = vector.load %arg7[%c0_12, %c0_13] : memref<1x8xf32, #tpu.memory_space<vmem>>, vector<1x8xf32>
    %29 = vector.broadcast %28 : vector<1x8xf32> to vector<128x8xf32>
    %30 = arith.mulf %27, %29 : vector<128x8xf32>
    %cst_14 = arith.constant dense<0.000000e+00> : vector<128xf32>
    %31 = vector.multi_reduction <add>, %30, %cst_14 [1] : vector<128x8xf32> to vector<128xf32>
    %32 = vector.shape_cast %31 : vector<128xf32> to vector<128x1xf32>
    %c0_15 = arith.constant 0 : index
    %c0_16 = arith.constant 0 : index
    %33 = vector.load %arg8[%c0_15, %c0_16] : memref<1x1xf32, #tpu.memory_space<vmem>>, vector<1x1xf32>
    %34 = vector.broadcast %33 : vector<1x1xf32> to vector<128x1xf32>
    %35 = arith.addf %32, %34 : vector<128x1xf32>
    %cst_17 = arith.constant 0.000000e+00 : f32
    %36 = vector.broadcast %cst_17 : f32 to vector<128x1xf32>
    %37 = arith.maximumf %35, %36 : vector<128x1xf32>
    %38 = tpu.iota {dimensions = array<i32: 1>} : vector<128x128xi32>
    %c0_18 = arith.constant 0 : index
    %c0_19 = arith.constant 0 : index
    %39 = vector.load %arg2[%c0_18, %c0_19] : memref<128x1xi32, #tpu.memory_space<vmem>>, vector<128x1xi32>
    %40 = vector.broadcast %39 : vector<128x1xi32> to vector<128x128xi32>
    %41 = arith.cmpi eq, %40, %38 : vector<128x128xi32>
    %42 = arith.extui %41 : vector<128x128xi1> to vector<128x128xi32>
    %43 = arith.sitofp %42 : vector<128x128xi32> to vector<128x128xf32>
    %c0_20 = arith.constant 0 : index
    %c0_21 = arith.constant 0 : index
    %44 = vector.load %arg10[%c0_20, %c0_21] : memref<1x128xf32, #tpu.memory_space<vmem>>, vector<1x128xf32>
    %45 = vector.broadcast %37 : vector<128x1xf32> to vector<128x128xf32>
    %46 = arith.mulf %45, %43 : vector<128x128xf32>
    %cst_22 = arith.constant dense<0.000000e+00> : vector<128xf32>
    %47 = vector.multi_reduction <add>, %46, %cst_22 [0] : vector<128x128xf32> to vector<128xf32>
    %48 = vector.shape_cast %47 : vector<128xf32> to vector<1x128xf32>
    %49 = arith.addf %44, %48 : vector<1x128xf32>
    %c0_23 = arith.constant 0 : index
    %c0_24 = arith.constant 0 : index
    %50 = vector.load %arg10[%c0_23, %c0_24] : memref<1x128xf32, #tpu.memory_space<vmem>>, vector<1x128xf32>
    tpu.vector_store %arg10[%c0_23, %c0_24], %49 {strides = array<i32>} : memref<1x128xf32, #tpu.memory_space<vmem>>, vector<1x128xf32>,
    %c2_i32 = arith.constant 2 : i32
    %51 = arith.cmpi eq, %arg0, %c2_i32 : i32
    %52 = arith.extui %51 : i1 to i32
    %c0_i32_25 = arith.constant 0 : i32
    %53 = arith.cmpi ne, %52, %c0_i32_25 : i32
    scf.if %53 {
      %c0_26 = arith.constant 0 : index
      %c0_27 = arith.constant 0 : index
      %54 = vector.load %arg10[%c0_26, %c0_27] : memref<1x128xf32, #tpu.memory_space<vmem>>, vector<1x128xf32>
      %c0_28 = arith.constant 0 : index
      %c0_29 = arith.constant 0 : index
      %55 = vector.load %arg9[%c0_28, %c0_29] : memref<1x128xf32, #tpu.memory_space<vmem>>, vector<1x128xf32>
      %56 = arith.mulf %54, %55 : vector<1x128xf32>
      %c0_30 = arith.constant 0 : index
      %c0_31 = arith.constant 0 : index
      %57 = vector.load %arg10[%c0_30, %c0_31] : memref<1x128xf32, #tpu.memory_space<vmem>>, vector<1x128xf32>
      tpu.vector_store %arg10[%c0_30, %c0_31], %56 {strides = array<i32>} : memref<1x128xf32, #tpu.memory_space<vmem>>, vector<1x128xf32>,
    } else {
    }
    return
  }
  func.func @transform_0(%arg0: i32) -> (i32, i32) {
    %c0_i32 = arith.constant 0 : i32
    %c0_i32_0 = arith.constant 0 : i32
    return %arg0, %c0_i32 : i32, i32
  }
  func.func @transform_1(%arg0: i32) -> (i32, i32) {
    %c0_i32 = arith.constant 0 : i32
    %c0_i32_0 = arith.constant 0 : i32
    return %arg0, %c0_i32 : i32, i32
  }
  func.func @transform_2(%arg0: i32) -> (i32, i32) {
    %c0_i32 = arith.constant 0 : i32
    %c0_i32_0 = arith.constant 0 : i32
    %c0_i32_1 = arith.constant 0 : i32
    return %c0_i32, %c0_i32_0 : i32, i32
  }
  func.func @transform_3(%arg0: i32) -> (i32, i32) {
    %c0_i32 = arith.constant 0 : i32
    %c0_i32_0 = arith.constant 0 : i32
    %c0_i32_1 = arith.constant 0 : i32
    return %c0_i32, %c0_i32_0 : i32, i32
  }
  func.func @transform_4(%arg0: i32) -> (i32, i32) {
    %c0_i32 = arith.constant 0 : i32
    %c0_i32_0 = arith.constant 0 : i32
    %c0_i32_1 = arith.constant 0 : i32
    return %c0_i32, %c0_i32_0 : i32, i32
  }
  func.func @transform_5(%arg0: i32) -> (i32, i32) {
    %c0_i32 = arith.constant 0 : i32
    %c0_i32_0 = arith.constant 0 : i32
    %c0_i32_1 = arith.constant 0 : i32
    return %c0_i32, %c0_i32_0 : i32, i32
  }
  func.func @transform_6(%arg0: i32) -> (i32, i32) {
    %c0_i32 = arith.constant 0 : i32
    %c0_i32_0 = arith.constant 0 : i32
    %c0_i32_1 = arith.constant 0 : i32
    return %c0_i32, %c0_i32_0 : i32, i32
  }
  func.func @transform_7(%arg0: i32) -> (i32, i32) {
    %c0_i32 = arith.constant 0 : i32
    %c0_i32_0 = arith.constant 0 : i32
    %c0_i32_1 = arith.constant 0 : i32
    return %c0_i32, %c0_i32_0 : i32, i32
  }
  func.func @transform_8(%arg0: i32) -> (i32, i32) {
    %c0_i32 = arith.constant 0 : i32
    %c0_i32_0 = arith.constant 0 : i32
    %c0_i32_1 = arith.constant 0 : i32
    return %c0_i32, %c0_i32_0 : i32, i32
  }
  func.func @transform_9(%arg0: i32) -> (i32, i32) {
    %c0_i32 = arith.constant 0 : i32
    %c0_i32_0 = arith.constant 0 : i32
    %c0_i32_1 = arith.constant 0 : i32
    return %c0_i32, %c0_i32_0 : i32, i32
  }
}

</mosaic_0001>

<llo_original>
// kernel: tpu_custom_call.1
$region0: #{tpu_custom_call.1}
  #allocation0 [shape = 'u32[]', space=smem, size = 0x4, offset = 0x4, fixed_abs, tag = 'smem constant byte address 0x4 - core index']
  #allocation1 [shape = 'u32[144,128]{1,0:T(1,128)}', space=vmem, size = 0x12000, scoped, tag = 'internal scratch']
  #allocation2 [shape = 'f32[1,1]{1,0:T(1,128)S(1)}', space=vmem, size = 0x200, scoped, tag = 'scoped memory for tpu_custom_call.1']
  %s0 = inlined_call_operand.vmem [shape: f32[384,2], index: 0, kind: input, shape index: {}]
  %s1 = inlined_call_operand.vmem [shape: s32[384,1], index: 1, kind: input, shape index: {}]
  %s2 = inlined_call_operand.vmem [shape: f32[2,16], index: 2, kind: input, shape index: {}]
  %s3 = inlined_call_operand.vmem [shape: f32[1,16], index: 3, kind: input, shape index: {}]
  %s4 = inlined_call_operand.vmem [shape: f32[16,8], index: 4, kind: input, shape index: {}]
  %s5 = inlined_call_operand.vmem [shape: f32[1,8], index: 5, kind: input, shape index: {}]
  %s6 = inlined_call_operand.vmem [shape: f32[1,8], index: 6, kind: input, shape index: {}]
  %s7 = inlined_call_operand.<no memory space> [shape: f32[1,1], index: 7, kind: input, shape index: {}]
  %s8 = inlined_call_operand.vmem [shape: f32[1,128], index: 8, kind: input, shape index: {}]
  %s9 = inlined_call_operand.hbm [shape: f32[1,128], index: 9, kind: output, shape index: {}]
  %s10 = sld [smem:[#allocation0]]
  $region77: #{tpu_custom_call.1} parent=0
    _
  %s12 = ssub.s32 1, %s10
  %s13 = scalar_select 0, %s12, %s10
  %v14 = vstv %s7
  %15 = vst [vmem:[#allocation2] sm:$0x1] %v14
  $region1: #{tpu_custom_call.1} parent=0
    #allocation3 [shape = 'u8[512]{0}', space=vmem, size = 0x400, scoped, tag = 'output window, operand 0, single buffered']
    #allocation4 [shape = 's32[2]{0}', space=sflag, size = 0x8, scoped, tag = 'scoped memory for tpu_custom_call.1']
    %16 = vsyncpa [#allocation4], 0
    loop: start=0, step=1, limit=5
    $region2: #{tpu_custom_call.1} parent=1 // loop_pre_header
      _
    $region3: #{tpu_custom_call.1} parent=1 // loop_header
      %s18 = sphi 0, %s22
      %p19 = scmp.ge.s32.totalorder %s18, 5
      %s28 = sphi 0, %s30
      %s31 = sphi 0, %s28
      %s32 = sphi 0, %s31
      %s48 = sphi 0, %s32
      %s54 = sphi 0, %s56
      %s57 = sphi 0, %s54
      %s58 = sphi 0, %s57
      %s74 = sphi 0, %s58
      %s78 = sphi 0, %s78
      %s80 = sphi 0, %s78
      %s81 = sphi 0, %s80
      %s95 = sphi 0, %s81
      %s99 = sphi 0, %s99
      %s101 = sphi 0, %s99
      %s102 = sphi 0, %s101
      %s116 = sphi 0, %s102
      %s120 = sphi 0, %s120
      %s122 = sphi 0, %s120
      %s123 = sphi 0, %s122
      %s137 = sphi 0, %s123
      %s141 = sphi 0, %s141
      %s143 = sphi 0, %s141
      %s144 = sphi 0, %s143
      %s158 = sphi 0, %s144
      %s162 = sphi 0, %s162
      %s164 = sphi 0, %s162
      %s165 = sphi 0, %s164
      %s179 = sphi 0, %s165
      %s183 = sphi 0, %s183
      %s185 = sphi 0, %s183
      %s186 = sphi 0, %s185
      %s200 = sphi 0, %s186
      %s204 = sphi 0, %s204
      %s206 = sphi 0, %s204
      %s207 = sphi 0, %s206
      %s221 = sphi 0, %s207
      %s225 = sphi 0, %s225
      %s227 = sphi 0, %s225
      %s228 = sphi 0, %s227
      %s242 = sphi 0, %s228
    $region4: #{tpu_custom_call.1} parent=1 // loop_header_branch
      %21 = sbr.rel (%p19) target = $region8
    $region5: #{tpu_custom_call.1} parent=1 // loop_body
      %s23 = ssub.s32 %s18, 1
      %s24 = ssub.s32 %s18, 2
      %s25 = sadd.s32 %s18, 1
      %s26 = ssub.s32 %s18, %s25
      %p27 = scmp.eq.s32.totalorder %s26, 0
      %s29 = sadd.s32 %s28, 1
      %s30 = scalar_select %p27, %s28, %s29
      %p33 = pneg %p27
      %p34 = scmp.eq.s32.totalorder %s18, 2
      %p35 = por %p33, %p34
      %p36 = scmp.ne.s32.totalorder %s28, %s31
      %p37 = scmp.eq.s32.totalorder %s18, 0
      %p38 = por %p36, %p37
      %p39 = scmp.ne.s32.totalorder %s28, %s31
      %p40 = scmp.eq.s32.totalorder %s23, 2
      %p41 = por %p39, %p40
      %p42 = scmp.ne.s32.totalorder %s31, %s32
      %p43 = scmp.eq.s32.totalorder %s23, 0
      %p44 = por %p42, %p43
      %p45 = scmp.ne.s32.totalorder %s31, %s32
      %p46 = scmp.eq.s32.totalorder %s24, 2
      %p47 = por %p45, %p46
      %p49 = scmp.ne.s32.totalorder %s32, %s48
      %p50 = scmp.eq.s32.totalorder %s24, 0
      %p51 = por %p49, %p50
      %s52 = ssub.s32 %s18, %s25
      %p53 = scmp.eq.s32.totalorder %s52, 0
      %s55 = sadd.s32 %s54, 1
      %s56 = scalar_select %p53, %s54, %s55
      %p59 = pneg %p53
      %p60 = scmp.eq.s32.totalorder %s18, 2
      %p61 = por %p59, %p60
      %p62 = scmp.ne.s32.totalorder %s54, %s57
      %p63 = scmp.eq.s32.totalorder %s18, 0
      %p64 = por %p62, %p63
      %p65 = scmp.ne.s32.totalorder %s54, %s57
      %p66 = scmp.eq.s32.totalorder %s23, 2
      %p67 = por %p65, %p66
      %p68 = scmp.ne.s32.totalorder %s57, %s58
      %p69 = scmp.eq.s32.totalorder %s23, 0
      %p70 = por %p68, %p69
      %p71 = scmp.ne.s32.totalorder %s57, %s58
      %p72 = scmp.eq.s32.totalorder %s24, 2
      %p73 = por %p71, %p72
      %p75 = scmp.ne.s32.totalorder %s58, %s74
      %p76 = scmp.eq.s32.totalorder %s24, 0
      %p77 = por %p75, %p76
      %s79 = sadd.s32 %s78, 1
      %p82 = scmp.eq.s32.totalorder %s18, 2
      %p83 = scmp.ne.s32.totalorder %s78, %s80
      %p84 = scmp.eq.s32.totalorder %s18, 0
      %p85 = por %p83, %p84
      %p86 = scmp.ne.s32.totalorder %s78, %s80
      %p87 = scmp.eq.s32.totalorder %s23, 2
      %p88 = por %p86, %p87
      %p89 = scmp.ne.s32.totalorder %s80, %s81
      %p90 = scmp.eq.s32.totalorder %s23, 0
      %p91 = por %p89, %p90
      %p92 = scmp.ne.s32.totalorder %s80, %s81
      %p93 = scmp.eq.s32.totalorder %s24, 2
      %p94 = por %p92, %p93
      %p96 = scmp.ne.s32.totalorder %s81, %s95
      %p97 = scmp.eq.s32.totalorder %s24, 0
      %p98 = por %p96, %p97
      %s100 = sadd.s32 %s99, 1
      %p103 = scmp.eq.s32.totalorder %s18, 2
      %p104 = scmp.ne.s32.totalorder %s99, %s101
      %p105 = scmp.eq.s32.totalorder %s18, 0
      %p106 = por %p104, %p105
      %p107 = scmp.ne.s32.totalorder %s99, %s101
      %p108 = scmp.eq.s32.totalorder %s23, 2
      %p109 = por %p107, %p108
      %p110 = scmp.ne.s32.totalorder %s101, %s102
      %p111 = scmp.eq.s32.totalorder %s23, 0
      %p112 = por %p110, %p111
      %p113 = scmp.ne.s32.totalorder %s101, %s102
      %p114 = scmp.eq.s32.totalorder %s24, 2
      %p115 = por %p113, %p114
      %p117 = scmp.ne.s32.totalorder %s102, %s116
      %p118 = scmp.eq.s32.totalorder %s24, 0
      %p119 = por %p117, %p118
      %s121 = sadd.s32 %s120, 1
      %p124 = scmp.eq.s32.totalorder %s18, 2
      %p125 = scmp.ne.s32.totalorder %s120, %s122
      %p126 = scmp.eq.s32.totalorder %s18, 0
      %p127 = por %p125, %p126
      %p128 = scmp.ne.s32.totalorder %s120, %s122
      %p129 = scmp.eq.s32.totalorder %s23, 2
      %p130 = por %p128, %p129
      %p131 = scmp.ne.s32.totalorder %s122, %s123
      %p132 = scmp.eq.s32.totalorder %s23, 0
      %p133 = por %p131, %p132
      %p134 = scmp.ne.s32.totalorder %s122, %s123
      %p135 = scmp.eq.s32.totalorder %s24, 2
      %p136 = por %p134, %p135
      %p138 = scmp.ne.s32.totalorder %s123, %s137
      %p139 = scmp.eq.s32.totalorder %s24, 0
      %p140 = por %p138, %p139
      %s142 = sadd.s32 %s141, 1
      %p145 = scmp.eq.s32.totalorder %s18, 2
      %p146 = scmp.ne.s32.totalorder %s141, %s143
      %p147 = scmp.eq.s32.totalorder %s18, 0
      %p148 = por %p146, %p147
      %p149 = scmp.ne.s32.totalorder %s141, %s143
      %p150 = scmp.eq.s32.totalorder %s23, 2
      %p151 = por %p149, %p150
      %p152 = scmp.ne.s32.totalorder %s143, %s144
      %p153 = scmp.eq.s32.totalorder %s23, 0
      %p154 = por %p152, %p153
      %p155 = scmp.ne.s32.totalorder %s143, %s144
      %p156 = scmp.eq.s32.totalorder %s24, 2
      %p157 = por %p155, %p156
      %p159 = scmp.ne.s32.totalorder %s144, %s158
      %p160 = scmp.eq.s32.totalorder %s24, 0
      %p161 = por %p159, %p160
      %s163 = sadd.s32 %s162, 1
      %p166 = scmp.eq.s32.totalorder %s18, 2
      %p167 = scmp.ne.s32.totalorder %s162, %s164
      %p168 = scmp.eq.s32.totalorder %s18, 0
      %p169 = por %p167, %p168
      %p170 = scmp.ne.s32.totalorder %s162, %s164
      %p171 = scmp.eq.s32.totalorder %s23, 2
      %p172 = por %p170, %p171
      %p173 = scmp.ne.s32.totalorder %s164, %s165
      %p174 = scmp.eq.s32.totalorder %s23, 0
      %p175 = por %p173, %p174
      %p176 = scmp.ne.s32.totalorder %s164, %s165
      %p177 = scmp.eq.s32.totalorder %s24, 2
      %p178 = por %p176, %p177
      %p180 = scmp.ne.s32.totalorder %s165, %s179
      %p181 = scmp.eq.s32.totalorder %s24, 0
      %p182 = por %p180, %p181
      %s184 = sadd.s32 %s183, 1
      %p187 = scmp.eq.s32.totalorder %s18, 2
      %p188 = scmp.ne.s32.totalorder %s183, %s185
      %p189 = scmp.eq.s32.totalorder %s18, 0
      %p190 = por %p188, %p189
      %p191 = scmp.ne.s32.totalorder %s183, %s185
      %p192 = scmp.eq.s32.totalorder %s23, 2
      %p193 = por %p191, %p192
      %p194 = scmp.ne.s32.totalorder %s185, %s186
      %p195 = scmp.eq.s32.totalorder %s23, 0
      %p196 = por %p194, %p195
      %p197 = scmp.ne.s32.totalorder %s185, %s186
      %p198 = scmp.eq.s32.totalorder %s24, 2
      %p199 = por %p197, %p198
      %p201 = scmp.ne.s32.totalorder %s186, %s200
      %p202 = scmp.eq.s32.totalorder %s24, 0
      %p203 = por %p201, %p202
      %s205 = sadd.s32 %s204, 1
      %p208 = scmp.eq.s32.totalorder %s18, 2
      %p209 = scmp.ne.s32.totalorder %s204, %s206
      %p210 = scmp.eq.s32.totalorder %s18, 0
      %p211 = por %p209, %p210
      %p212 = scmp.ne.s32.totalorder %s204, %s206
      %p213 = scmp.eq.s32.totalorder %s23, 2
      %p214 = por %p212, %p213
      %p215 = scmp.ne.s32.totalorder %s206, %s207
      %p216 = scmp.eq.s32.totalorder %s23, 0
      %p217 = por %p215, %p216
      %p218 = scmp.ne.s32.totalorder %s206, %s207
      %p219 = scmp.eq.s32.totalorder %s24, 2
      %p220 = por %p218, %p219
      %p222 = scmp.ne.s32.totalorder %s207, %s221
      %p223 = scmp.eq.s32.totalorder %s24, 0
      %p224 = por %p222, %p223
      %s226 = sadd.s32 %s225, 1
      %p229 = scmp.eq.s32.totalorder %s18, 2
      %p230 = scmp.ne.s32.totalorder %s225, %s227
      %p231 = scmp.eq.s32.totalorder %s18, 0
      %p232 = por %p230, %p231
      %p233 = scmp.ne.s32.totalorder %s225, %s227
      %p234 = scmp.eq.s32.totalorder %s23, 2
      %p235 = por %p233, %p234
      %p236 = scmp.ne.s32.totalorder %s227, %s228
      %p237 = scmp.eq.s32.totalorder %s23, 0
      %p238 = por %p236, %p237
      %p239 = scmp.ne.s32.totalorder %s227, %s228
      %p240 = scmp.eq.s32.totalorder %s24, 2
      %p241 = por %p239, %p240
      %p243 = scmp.ne.s32.totalorder %s228, %s242
      %p244 = scmp.eq.s32.totalorder %s24, 0
      %p245 = por %p243, %p244
      %p246 = scmp.le.s32.totalorder 1, %s18
      %p247 = scmp.lt.s32.totalorder %s18, 4
      %p248 = pnand %p246, %p247
      %p249 = pneg %p248
      // Predicated region
      $region9: #{tpu_custom_call.1} parent=5 // pred_check
        _
      $region10: #{tpu_custom_call.1} parent=5 // pred_check_branch
        %251 = sbr.rel (%p248) target = $region12
      $region11: #{tpu_custom_call.1} parent=5 // pred_region
        %s252 = ssub.s32 %s18, 1
        // Predicated region
        $region13: #{tpu_custom_call.1} parent=11 // pred_check
          %p253 = pneg %p91
        $region14: #{tpu_custom_call.1} parent=11 // pred_check_branch
          %255 = sbr.rel (%p253) target = $region16
        $region15: #{tpu_custom_call.1} parent=11 // pred_region
          _
        $region16: #{tpu_custom_call.1} parent=11 // pred_fallthru
          _
        // Predicated region
        $region17: #{tpu_custom_call.1} parent=11 // pred_check
          %p256 = pneg %p112
        $region18: #{tpu_custom_call.1} parent=11 // pred_check_branch
          %258 = sbr.rel (%p256) target = $region20
        $region19: #{tpu_custom_call.1} parent=11 // pred_region
          _
        $region20: #{tpu_custom_call.1} parent=11 // pred_fallthru
          _
        // Predicated region
        $region21: #{tpu_custom_call.1} parent=11 // pred_check
          %p259 = pneg %p133
        $region22: #{tpu_custom_call.1} parent=11 // pred_check_branch
          %261 = sbr.rel (%p259) target = $region24
        $region23: #{tpu_custom_call.1} parent=11 // pred_region
          _
        $region24: #{tpu_custom_call.1} parent=11 // pred_fallthru
          _
        // Predicated region
        $region25: #{tpu_custom_call.1} parent=11 // pred_check
          %p262 = pneg %p154
        $region26: #{tpu_custom_call.1} parent=11 // pred_check_branch
          %264 = sbr.rel (%p262) target = $region28
        $region27: #{tpu_custom_call.1} parent=11 // pred_region
          _
        $region28: #{tpu_custom_call.1} parent=11 // pred_fallthru
          _
        // Predicated region
        $region29: #{tpu_custom_call.1} parent=11 // pred_check
          %p265 = pneg %p175
        $region30: #{tpu_custom_call.1} parent=11 // pred_check_branch
          %267 = sbr.rel (%p265) target = $region32
        $region31: #{tpu_custom_call.1} parent=11 // pred_region
          _
        $region32: #{tpu_custom_call.1} parent=11 // pred_fallthru
          _
        // Predicated region
        $region33: #{tpu_custom_call.1} parent=11 // pred_check
          %p268 = pneg %p196
        $region34: #{tpu_custom_call.1} parent=11 // pred_check_branch
          %270 = sbr.rel (%p268) target = $region36
        $region35: #{tpu_custom_call.1} parent=11 // pred_region
          _
        $region36: #{tpu_custom_call.1} parent=11 // pred_fallthru
          _
        // Predicated region
        $region37: #{tpu_custom_call.1} parent=11 // pred_check
          %p271 = pneg %p217
        $region38: #{tpu_custom_call.1} parent=11 // pred_check_branch
          %273 = sbr.rel (%p271) target = $region40
        $region39: #{tpu_custom_call.1} parent=11 // pred_region
          _
        $region40: #{tpu_custom_call.1} parent=11 // pred_fallthru
          _
      $region12: #{tpu_custom_call.1} parent=5 // pred_fallthru
        _
      %p274 = scmp.lt.s32.totalorder %s18, 3
      // Predicated region
      $region41: #{tpu_custom_call.1} parent=5 // pred_check
        %p275 = pneg %p274
      $region42: #{tpu_custom_call.1} parent=5 // pred_check_branch
        %277 = sbr.rel (%p275) target = $region44
      $region43: #{tpu_custom_call.1} parent=5 // pred_region
        // Predicated region
        $region45: #{tpu_custom_call.1} parent=43 // pred_check
          %p278 = pneg %p38
        $region46: #{tpu_custom_call.1} parent=43 // pred_check_branch
          %280 = sbr.rel (%p278) target = $region48
        $region47: #{tpu_custom_call.1} parent=43 // pred_region
          %s281 = smul.u32 16, %s18
          %p282 = scmp.lt.s32.totalorder %s281, 47
          %s283 = scalar_select %p282, %s281, 47
          %s284 = smul.addr %s283, 8
          %s285 = scalar_lea.vmem %s0, %s284
          %s286 = smul.u32 16, %s18
        $region48: #{tpu_custom_call.1} parent=43 // pred_fallthru
          _
        // Predicated region
        $region49: #{tpu_custom_call.1} parent=43 // pred_check
          %p287 = pneg %p64
        $region50: #{tpu_custom_call.1} parent=43 // pred_check_branch
          %289 = sbr.rel (%p287) target = $region52
        $region51: #{tpu_custom_call.1} parent=43 // pred_region
          %s290 = smul.u32 16, %s18
          %p291 = scmp.lt.s32.totalorder %s290, 47
          %s292 = scalar_select %p291, %s290, 47
          %s293 = smul.addr %s292, 8
          %s294 = scalar_lea.vmem %s1, %s293
          %s295 = smul.u32 16, %s18
        $region52: #{tpu_custom_call.1} parent=43 // pred_fallthru
          _
      $region44: #{tpu_custom_call.1} parent=5 // pred_fallthru
        _
      %p296 = scmp.le.s32.totalorder 1, %s18
      %p297 = scmp.lt.s32.totalorder %s18, 4
      %p298 = pnand %p296, %p297
      %p299 = pneg %p298
      // Predicated region
      $region53: #{tpu_custom_call.1} parent=5 // pred_check
        _
      $region54: #{tpu_custom_call.1} parent=5 // pred_check_branch
        %301 = sbr.rel (%p298) target = $region56
      $region55: #{tpu_custom_call.1} parent=5 // pred_region
        %s302 = ssub.s32 %s18, 1
        %s303 = smul.u32 16, %s23
        %p304 = scmp.lt.s32.totalorder %s303, 47
        %s305 = scalar_select %p304, %s303, 47
        %s306 = smul.addr %s305, 8
        %s307 = scalar_lea.vmem %s0, %s306
        %p308 = pneg %p44
        %p309 = pneg %p41
        %s310 = smul.u32 16, %s23
        %p311 = scmp.lt.s32.totalorder %s310, 47
        %s312 = scalar_select %p311, %s310, 47
        %s313 = smul.addr %s312, 8
        %s314 = scalar_lea.vmem %s1, %s313
        %p315 = pneg %p70
        %p316 = pneg %p67
        %p317 = pneg %p91
        %p318 = pneg %p88
        %p319 = pneg %p112
        %p320 = pneg %p109
        %p321 = pneg %p133
        %p322 = pneg %p130
        %p323 = pneg %p154
        %p324 = pneg %p151
        %p325 = pneg %p175
        %p326 = pneg %p172
        %p327 = pneg %p196
        %p328 = pneg %p193
        %p329 = pneg %p217
        %p330 = pneg %p214
        %p331 = pneg %p238
        %p332 = pneg %p235
        %s333 = smul.u32 16, %s23
        %p334 = scmp.lt.s32.totalorder %s333, 47
        %s335 = scalar_select %p334, %s333, 47
        %s336 = smul.addr %s335, 8
        %s337 = scalar_lea.vmem %s0, %s336
        %s338 = smul.u32 16, %s23
        %s339 = smul.u32 16, %s23
        %p340 = scmp.lt.s32.totalorder %s339, 47
        %s341 = scalar_select %p340, %s339, 47
        %s342 = smul.addr %s341, 8
        %s343 = scalar_lea.vmem %s1, %s342
        %s344 = smul.u32 16, %s23
        %p345 = scmp.eq.s32.totalorder %s23, 0
        // Predicated region
        $region57: #{tpu_custom_call.1} parent=55 // pred_check
          %p346 = pneg %p345
        $region58: #{tpu_custom_call.1} parent=55 // pred_check_branch
          %348 = sbr.rel (%p346) target = $region60
        $region59: #{tpu_custom_call.1} parent=55 // pred_region
          %349 = vst [vmem:[#allocation3] sm:$0x1] 0.0
        $region60: #{tpu_custom_call.1} parent=55 // pred_fallthru
          _
        %v350 = vld [vmem:[%s337] sm:$0xff]
        %v351 = vld [vmem:[%s337 + $0x8] sm:$0xff]
        %v352 = vld [vmem:[%s337 + $0x10] sm:$0xff]
        %v353 = vld [vmem:[%s337 + $0x18] sm:$0xff]
        %v354 = vld [vmem:[%s337 + $0x20] sm:$0xff]
        %v355 = vld [vmem:[%s337 + $0x28] sm:$0xff]
        %v356 = vld [vmem:[%s337 + $0x30] sm:$0xff]
        %v357 = vld [vmem:[%s337 + $0x38] sm:$0xff]
        %v358 = vld [vmem:[%s337 + $0x40] sm:$0xff]
        %v359 = vld [vmem:[%s337 + $0x48] sm:$0xff]
        %v360 = vld [vmem:[%s337 + $0x50] sm:$0xff]
        %v361 = vld [vmem:[%s337 + $0x58] sm:$0xff]
        %v362 = vld [vmem:[%s337 + $0x60] sm:$0xff]
        %v363 = vld [vmem:[%s337 + $0x68] sm:$0xff]
        %v364 = vld [vmem:[%s337 + $0x70] sm:$0xff]
        %v365 = vld [vmem:[%s337 + $0x78] sm:$0xff]
        %v366 = vld [vmem:[%s2] sm:$0x3]
        %368 = vset.pattern.permute.xlu0 0
        %369 = vperm.xlu0 %368, %v350
        %v370 = vpop.permute.xlu0 %369
        %373 = vset.pattern.permute.xlu0 0
        %374 = vperm.xlu0 %373, %v351
        %v375 = vpop.permute.xlu0 %374
        %378 = vset.pattern.permute.xlu0 0
        %379 = vperm.xlu0 %378, %v352
        %v380 = vpop.permute.xlu0 %379
        %383 = vset.pattern.permute.xlu0 0
        %384 = vperm.xlu0 %383, %v353
        %v385 = vpop.permute.xlu0 %384
        %388 = vset.pattern.permute.xlu0 0
        %389 = vperm.xlu0 %388, %v354
        %v390 = vpop.permute.xlu0 %389
        %393 = vset.pattern.permute.xlu0 0
        %394 = vperm.xlu0 %393, %v355
        %v395 = vpop.permute.xlu0 %394
        %398 = vset.pattern.permute.xlu0 0
        %399 = vperm.xlu0 %398, %v356
        %v400 = vpop.permute.xlu0 %399
        %403 = vset.pattern.permute.xlu0 0
        %404 = vperm.xlu0 %403, %v357
        %v405 = vpop.permute.xlu0 %404
        %408 = vset.pattern.permute.xlu0 0
        %409 = vperm.xlu0 %408, %v358
        %v410 = vpop.permute.xlu0 %409
        %413 = vset.pattern.permute.xlu0 0
        %414 = vperm.xlu0 %413, %v359
        %v415 = vpop.permute.xlu0 %414
        %418 = vset.pattern.permute.xlu0 0
        %419 = vperm.xlu0 %418, %v360
        %v420 = vpop.permute.xlu0 %419
        %423 = vset.pattern.permute.xlu0 0
        %424 = vperm.xlu0 %423, %v361
        %v425 = vpop.permute.xlu0 %424
        %428 = vset.pattern.permute.xlu0 0
        %429 = vperm.xlu0 %428, %v362
        %v430 = vpop.permute.xlu0 %429
        %433 = vset.pattern.permute.xlu0 0
        %434 = vperm.xlu0 %433, %v363
        %v435 = vpop.permute.xlu0 %434
        %438 = vset.pattern.permute.xlu0 0
        %439 = vperm.xlu0 %438, %v364
        %v440 = vpop.permute.xlu0 %439
        %443 = vset.pattern.permute.xlu0 0
        %444 = vperm.xlu0 %443, %v365
        %v445 = vpop.permute.xlu0 %444
        %v447 = vlaneseq
        %v448 = vshrl.u32 %v447, 7
        %v449 = vsub.s32 0, %v448
        %v450 = vrot.slane %v366, %v449
        %v451 = vmul.f32 %v370, %v450
        %v452 = vmul.f32 %v375, %v450
        %v453 = vmul.f32 %v380, %v450
        %v454 = vmul.f32 %v385, %v450
        %v455 = vmul.f32 %v390, %v450
        %v456 = vmul.f32 %v395, %v450
        %v457 = vmul.f32 %v400, %v450
        %v458 = vmul.f32 %v405, %v450
        %v459 = vmul.f32 %v410, %v450
        %v460 = vmul.f32 %v415, %v450
        %v461 = vmul.f32 %v420, %v450
        %v462 = vmul.f32 %v425, %v450
        %v463 = vmul.f32 %v430, %v450
        %v464 = vmul.f32 %v435, %v450
        %v465 = vmul.f32 %v440, %v450
        %v466 = vmul.f32 %v445, %v450
        %467 = vset.pattern.permute.xlu0 1
        %468 = vperm.xlu0 %467, %v350
        %v469 = vpop.permute.xlu0 %468
        %471 = vset.pattern.permute.xlu0 1
        %472 = vperm.xlu0 %471, %v351
        %v473 = vpop.permute.xlu0 %472
        %475 = vset.pattern.permute.xlu0 1
        %476 = vperm.xlu0 %475, %v352
        %v477 = vpop.permute.xlu0 %476
        %479 = vset.pattern.permute.xlu0 1
        %480 = vperm.xlu0 %479, %v353
        %v481 = vpop.permute.xlu0 %480
        %483 = vset.pattern.permute.xlu0 1
        %484 = vperm.xlu0 %483, %v354
        %v485 = vpop.permute.xlu0 %484
        %487 = vset.pattern.permute.xlu0 1
        %488 = vperm.xlu0 %487, %v355
        %v489 = vpop.permute.xlu0 %488
        %491 = vset.pattern.permute.xlu0 1
        %492 = vperm.xlu0 %491, %v356
        %v493 = vpop.permute.xlu0 %492
        %495 = vset.pattern.permute.xlu0 1
        %496 = vperm.xlu0 %495, %v357
        %v497 = vpop.permute.xlu0 %496
        %499 = vset.pattern.permute.xlu0 1
        %500 = vperm.xlu0 %499, %v358
        %v501 = vpop.permute.xlu0 %500
        %503 = vset.pattern.permute.xlu0 1
        %504 = vperm.xlu0 %503, %v359
        %v505 = vpop.permute.xlu0 %504
        %507 = vset.pattern.permute.xlu0 1
        %508 = vperm.xlu0 %507, %v360
        %v509 = vpop.permute.xlu0 %508
        %511 = vset.pattern.permute.xlu0 1
        %512 = vperm.xlu0 %511, %v361
        %v513 = vpop.permute.xlu0 %512
        %515 = vset.pattern.permute.xlu0 1
        %516 = vperm.xlu0 %515, %v362
        %v517 = vpop.permute.xlu0 %516
        %519 = vset.pattern.permute.xlu0 1
        %520 = vperm.xlu0 %519, %v363
        %v521 = vpop.permute.xlu0 %520
        %523 = vset.pattern.permute.xlu0 1
        %524 = vperm.xlu0 %523, %v364
        %v525 = vpop.permute.xlu0 %524
        %527 = vset.pattern.permute.xlu0 1
        %528 = vperm.xlu0 %527, %v365
        %v529 = vpop.permute.xlu0 %528
        %v531 = vlaneseq
        %v532 = vshrl.u32 %v531, 7
        %v533 = vsub.s32 1, %v532
        %v534 = vrot.slane %v366, %v533
        %v535 = vmul.f32 %v469, %v534
        %v536 = vmul.f32 %v473, %v534
        %v537 = vmul.f32 %v477, %v534
        %v538 = vmul.f32 %v481, %v534
        %v539 = vmul.f32 %v485, %v534
        %v540 = vmul.f32 %v489, %v534
        %v541 = vmul.f32 %v493, %v534
        %v542 = vmul.f32 %v497, %v534
        %v543 = vmul.f32 %v501, %v534
        %v544 = vmul.f32 %v505, %v534
        %v545 = vmul.f32 %v509, %v534
        %v546 = vmul.f32 %v513, %v534
        %v547 = vmul.f32 %v517, %v534
        %v548 = vmul.f32 %v521, %v534
        %v549 = vmul.f32 %v525, %v534
        %v550 = vmul.f32 %v529, %v534
        %v551 = vadd.f32 %v451, %v535
        %v552 = vadd.f32 %v452, %v536
        %v553 = vadd.f32 %v453, %v537
        %v554 = vadd.f32 %v454, %v538
        %v555 = vadd.f32 %v455, %v539
        %v556 = vadd.f32 %v456, %v540
        %v557 = vadd.f32 %v457, %v541
        %v558 = vadd.f32 %v458, %v542
        %v559 = vadd.f32 %v459, %v543
        %v560 = vadd.f32 %v460, %v544
        %v561 = vadd.f32 %v461, %v545
        %v562 = vadd.f32 %v462, %v546
        %v563 = vadd.f32 %v463, %v547
        %v564 = vadd.f32 %v464, %v548
        %v565 = vadd.f32 %v465, %v549
        %v566 = vadd.f32 %v466, %v550
        %v567 = vld [vmem:[%s3] sm:$0x1]
        %v569 = vlaneseq
        %v570 = vshrl.u32 %v569, 7
        %v571 = vsub.s32 0, %v570
        %v572 = vrot.slane %v567, %v571
        %v574 = vadd.f32 %v551, %v572
        %v575 = vadd.f32 %v552, %v572
        %v576 = vadd.f32 %v553, %v572
        %v577 = vadd.f32 %v554, %v572
        %v578 = vadd.f32 %v555, %v572
        %v579 = vadd.f32 %v556, %v572
        %v580 = vadd.f32 %v557, %v572
        %v581 = vadd.f32 %v558, %v572
        %v582 = vadd.f32 %v559, %v572
        %v583 = vadd.f32 %v560, %v572
        %v584 = vadd.f32 %v561, %v572
        %v585 = vadd.f32 %v562, %v572
        %v586 = vadd.f32 %v563, %v572
        %v587 = vadd.f32 %v564, %v572
        %v588 = vadd.f32 %v565, %v572
        %v589 = vadd.f32 %v566, %v572
        %v590 = vmax.f32 %v574, 0.0
        %v591 = vmax.f32 %v575, 0.0
        %v592 = vmax.f32 %v576, 0.0
        %v593 = vmax.f32 %v577, 0.0
        %v594 = vmax.f32 %v578, 0.0
        %v595 = vmax.f32 %v579, 0.0
        %v596 = vmax.f32 %v580, 0.0
        %v597 = vmax.f32 %v581, 0.0
        %v598 = vmax.f32 %v582, 0.0
        %v599 = vmax.f32 %v583, 0.0
        %v600 = vmax.f32 %v584, 0.0
        %v601 = vmax.f32 %v585, 0.0
        %v602 = vmax.f32 %v586, 0.0
        %v603 = vmax.f32 %v587, 0.0
        %v604 = vmax.f32 %v588, 0.0
        %v605 = vmax.f32 %v589, 0.0
        %v606 = vld [vmem:[%s4] sm:$0xff]
        %v607 = vld [vmem:[%s4 + $0x8] sm:$0xff]
        %v608 = vld [vmem:[%s5] sm:$0x1]
        %v610 = vlaneseq
        %v611 = vshrl.u32 %v610, 7
        %v612 = vsub.s32 0, %v611
        %v613 = vrot.slane %v608, %v612
        %vm615 = vcmask 130048
        %v617 = vsel %vm615, %v590, 0
        %v620 = vsel %vm615, %v591, 0
        %v623 = vsel %vm615, %v592, 0
        %v626 = vsel %vm615, %v593, 0
        %v629 = vsel %vm615, %v594, 0
        %v632 = vsel %vm615, %v595, 0
        %v635 = vsel %vm615, %v596, 0
        %v638 = vsel %vm615, %v597, 0
        %v641 = vsel %vm615, %v598, 0
        %v644 = vsel %vm615, %v599, 0
        %v647 = vsel %vm615, %v600, 0
        %v650 = vsel %vm615, %v601, 0
        %v653 = vsel %vm615, %v602, 0
        %v656 = vsel %vm615, %v603, 0
        %v659 = vsel %vm615, %v604, 0
        %v662 = vsel %vm615, %v605, 0
        %664 = vmatprep.subr.mxu0 0.0
        %665 = vmatpush1.msra.mxu0 %v606
        %666 = vmatprep.subr.mxu0 0.0
        %667 = vmatpush1.msra.mxu0 %v607
        %668 = vmatprep.subr.mxu0 0.0
        %669 = vmatpush1.msra.mxu0 0.0
        %670 = vmatprep.subr.mxu0 0.0
        %671 = vmatpush1.msra.mxu0 0.0
        %672 = vmatprep.subr.mxu0 0.0
        %673 = vmatpush1.msra.mxu0 0.0
        %674 = vmatprep.subr.mxu0 0.0
        %675 = vmatpush1.msra.mxu0 0.0
        %676 = vmatprep.subr.mxu0 0.0
        %677 = vmatpush1.msra.mxu0 0.0
        %678 = vmatprep.subr.mxu0 0.0
        %679 = vmatpush1.msra.mxu0 0.0
        %680 = vmatprep.subr.mxu0 0.0
        %681 = vmatpush1.msra.mxu0 0.0
        %682 = vmatprep.subr.mxu0 0.0
        %683 = vmatpush1.msra.mxu0 0.0
        %684 = vmatprep.subr.mxu0 0.0
        %685 = vmatpush1.msra.mxu0 0.0
        %686 = vmatprep.subr.mxu0 0.0
        %687 = vmatpush1.msra.mxu0 0.0
        %688 = vmatprep.subr.mxu0 0.0
        %689 = vmatpush1.msra.mxu0 0.0
        %690 = vmatprep.subr.mxu0 0.0
        %691 = vmatpush1.msra.mxu0 0.0
        %692 = vmatprep.subr.mxu0 0.0
        %693 = vmatpush1.msra.mxu0 0.0
        %694 = vmatprep.subr.mxu0 0.0
        %695 = vmatpush1.msra.mxu0 0.0
        %696 = vmatprep.subr.mxu0 0.0
        %697 = vmatpush1.msra.mxu0 0.0
        %698 = vmatprep.subr.mxu0 0.0
        %699 = vmatpush1.msra.mxu0 0.0
        %700 = vmatprep.subr.mxu0 0.0
        %701 = vmatpush1.msra.mxu0 0.0
        %702 = vmatprep.subr.mxu0 0.0
        %703 = vmatpush1.msra.mxu0 0.0
        %704 = vmatprep.subr.mxu0 0.0
        %705 = vmatpush1.msra.mxu0 0.0
        %706 = vmatprep.subr.mxu0 0.0
        %707 = vmatpush1.msra.mxu0 0.0
        %708 = vmatprep.subr.mxu0 0.0
        %709 = vmatpush1.msra.mxu0 0.0
        %710 = vmatprep.subr.mxu0 0.0
        %711 = vmatpush1.msra.mxu0 0.0
        %712 = vmatprep.subr.mxu0 0.0
        %713 = vmatpush1.msra.mxu0 0.0
        %714 = vmatprep.subr.mxu0 0.0
        %715 = vmatpush1.msra.mxu0 0.0
        %716 = vmatprep.subr.mxu0 0.0
        %717 = vmatpush1.msra.mxu0 0.0
        %718 = vmatprep.subr.mxu0 0.0
        %719 = vmatpush1.msra.mxu0 0.0
        %720 = vmatprep.subr.mxu0 0.0
        %721 = vmatpush1.msra.mxu0 0.0
        %722 = vmatprep.subr.mxu0 0.0
        %723 = vmatpush1.msra.mxu0 0.0
        %724 = vmatprep.subr.mxu0 0.0
        %725 = vmatpush1.msra.mxu0 0.0
        %726 = vmatprep.subr.mxu0 0.0
        %727 = vmatpush1.msra.mxu0 0.0
        %728 = vmatprep.mubr.f32.mxu0 0.0
        %729 = vmatmul.mubr.f32.gmra.mrb[0].mxu0 %v617
        %v730 = vpop.f32.mrb[0].mxu0
        %v731 = vadd.f32 %v613, %v730
        %v732 = vpop.f32.mrb[0].mxu0
        %733 = vmatprep.mubr.f32.mxu0 0.0
        %734 = vmatmul.mubr.f32.gmra.mrb[0].mxu0 %v620
        %v735 = vpop.f32.mrb[0].mxu0
        %v736 = vadd.f32 %v613, %v735
        %v737 = vpop.f32.mrb[0].mxu0
        %738 = vmatprep.mubr.f32.mxu0 0.0
        %739 = vmatmul.mubr.f32.gmra.mrb[0].mxu0 %v623
        %v740 = vpop.f32.mrb[0].mxu0
        %v741 = vadd.f32 %v613, %v740
        %v742 = vpop.f32.mrb[0].mxu0
        %743 = vmatprep.mubr.f32.mxu0 0.0
        %744 = vmatmul.mubr.f32.gmra.mrb[0].mxu0 %v626
        %v745 = vpop.f32.mrb[0].mxu0
        %v746 = vadd.f32 %v613, %v745
        %v747 = vpop.f32.mrb[0].mxu0
        %748 = vmatprep.mubr.f32.mxu0 0.0
        %749 = vmatmul.mubr.f32.gmra.mrb[0].mxu0 %v629
        %v750 = vpop.f32.mrb[0].mxu0
        %v751 = vadd.f32 %v613, %v750
        %v752 = vpop.f32.mrb[0].mxu0
        %753 = vmatprep.mubr.f32.mxu0 0.0
        %754 = vmatmul.mubr.f32.gmra.mrb[0].mxu0 %v632
        %v755 = vpop.f32.mrb[0].mxu0
        %v756 = vadd.f32 %v613, %v755
        %v757 = vpop.f32.mrb[0].mxu0
        %758 = vmatprep.mubr.f32.mxu0 0.0
        %759 = vmatmul.mubr.f32.gmra.mrb[0].mxu0 %v635
        %v760 = vpop.f32.mrb[0].mxu0
        %v761 = vadd.f32 %v613, %v760
        %v762 = vpop.f32.mrb[0].mxu0
        %763 = vmatprep.mubr.f32.mxu0 0.0
        %764 = vmatmul.mubr.f32.gmra.mrb[0].mxu0 %v638
        %v765 = vpop.f32.mrb[0].mxu0
        %v766 = vadd.f32 %v613, %v765
        %v767 = vpop.f32.mrb[0].mxu0
        %768 = vmatprep.mubr.f32.mxu0 0.0
        %769 = vmatmul.mubr.f32.gmra.mrb[0].mxu0 %v641
        %v770 = vpop.f32.mrb[0].mxu0
        %v771 = vadd.f32 %v613, %v770
        %v772 = vpop.f32.mrb[0].mxu0
        %773 = vmatprep.mubr.f32.mxu0 0.0
        %774 = vmatmul.mubr.f32.gmra.mrb[0].mxu0 %v644
        %v775 = vpop.f32.mrb[0].mxu0
        %v776 = vadd.f32 %v613, %v775
        %v777 = vpop.f32.mrb[0].mxu0
        %778 = vmatprep.mubr.f32.mxu0 0.0
        %779 = vmatmul.mubr.f32.gmra.mrb[0].mxu0 %v647
        %v780 = vpop.f32.mrb[0].mxu0
        %v781 = vadd.f32 %v613, %v780
        %v782 = vpop.f32.mrb[0].mxu0
        %783 = vmatprep.mubr.f32.mxu0 0.0
        %784 = vmatmul.mubr.f32.gmra.mrb[0].mxu0 %v650
        %v785 = vpop.f32.mrb[0].mxu0
        %v786 = vadd.f32 %v613, %v785
        %v787 = vpop.f32.mrb[0].mxu0
        %788 = vmatprep.mubr.f32.mxu0 0.0
        %789 = vmatmul.mubr.f32.gmra.mrb[0].mxu0 %v653
        %v790 = vpop.f32.mrb[0].mxu0
        %v791 = vadd.f32 %v613, %v790
        %v792 = vpop.f32.mrb[0].mxu0
        %793 = vmatprep.mubr.f32.mxu0 0.0
        %794 = vmatmul.mubr.f32.gmra.mrb[0].mxu0 %v656
        %v795 = vpop.f32.mrb[0].mxu0
        %v796 = vadd.f32 %v613, %v795
        %v797 = vpop.f32.mrb[0].mxu0
        %798 = vmatprep.mubr.f32.mxu0 0.0
        %799 = vmatmul.mubr.f32.gmra.mrb[0].mxu0 %v659
        %v800 = vpop.f32.mrb[0].mxu0
        %v801 = vadd.f32 %v613, %v800
        %v802 = vpop.f32.mrb[0].mxu0
        %803 = vmatprep.mubr.f32.mxu0 0.0
        %804 = vmatmul.mubr.f32.gmra.mrb[0].mxu0 %v662
        %v805 = vpop.f32.mrb[0].mxu0
        %v806 = vadd.f32 %v613, %v805
        %v807 = vpop.f32.mrb[0].mxu0
        %808 = vdwg.mxu0
        %v809 = vmax.f32 %v731, 0.0
        %v810 = vmax.f32 %v736, 0.0
        %v811 = vmax.f32 %v741, 0.0
        %v812 = vmax.f32 %v746, 0.0
        %v813 = vmax.f32 %v751, 0.0
        %v814 = vmax.f32 %v756, 0.0
        %v815 = vmax.f32 %v761, 0.0
        %v816 = vmax.f32 %v766, 0.0
        %v817 = vmax.f32 %v771, 0.0
        %v818 = vmax.f32 %v776, 0.0
        %v819 = vmax.f32 %v781, 0.0
        %v820 = vmax.f32 %v786, 0.0
        %v821 = vmax.f32 %v791, 0.0
        %v822 = vmax.f32 %v796, 0.0
        %v823 = vmax.f32 %v801, 0.0
        %v824 = vmax.f32 %v806, 0.0
        %v825 = vld [vmem:[%s6] sm:$0x1]
        %v827 = vlaneseq
        %v828 = vshrl.u32 %v827, 7
        %v829 = vsub.s32 0, %v828
        %v830 = vrot.slane %v825, %v829
        %v832 = vmul.f32 %v809, %v830
        %v833 = vmul.f32 %v810, %v830
        %v834 = vmul.f32 %v811, %v830
        %v835 = vmul.f32 %v812, %v830
        %v836 = vmul.f32 %v813, %v830
        %v837 = vmul.f32 %v814, %v830
        %v838 = vmul.f32 %v815, %v830
        %v839 = vmul.f32 %v816, %v830
        %v840 = vmul.f32 %v817, %v830
        %v841 = vmul.f32 %v818, %v830
        %v842 = vmul.f32 %v819, %v830
        %v843 = vmul.f32 %v820, %v830
        %v844 = vmul.f32 %v821, %v830
        %v845 = vmul.f32 %v822, %v830
        %v846 = vmul.f32 %v823, %v830
        %v847 = vmul.f32 %v824, %v830
        %vm848 = vcmask 64512
        %v849 = vsel %vm848, %v832, 0.0
        %850 = vadd.xlane.f32.xlu0 %v849
        %v851 = vpop.xlane.xlu0 %850
        %v852 = vsel %vm848, %v833, 0.0
        %853 = vadd.xlane.f32.xlu0 %v852
        %v854 = vpop.xlane.xlu0 %853
        %v855 = vsel %vm848, %v834, 0.0
        %856 = vadd.xlane.f32.xlu0 %v855
        %v857 = vpop.xlane.xlu0 %856
        %v858 = vsel %vm848, %v835, 0.0
        %859 = vadd.xlane.f32.xlu0 %v858
        %v860 = vpop.xlane.xlu0 %859
        %v861 = vsel %vm848, %v836, 0.0
        %862 = vadd.xlane.f32.xlu0 %v861
        %v863 = vpop.xlane.xlu0 %862
        %v864 = vsel %vm848, %v837, 0.0
        %865 = vadd.xlane.f32.xlu0 %v864
        %v866 = vpop.xlane.xlu0 %865
        %v867 = vsel %vm848, %v838, 0.0
        %868 = vadd.xlane.f32.xlu0 %v867
        %v869 = vpop.xlane.xlu0 %868
        %v870 = vsel %vm848, %v839, 0.0
        %871 = vadd.xlane.f32.xlu0 %v870
        %v872 = vpop.xlane.xlu0 %871
        %v873 = vsel %vm848, %v840, 0.0
        %874 = vadd.xlane.f32.xlu0 %v873
        %v875 = vpop.xlane.xlu0 %874
        %v876 = vsel %vm848, %v841, 0.0
        %877 = vadd.xlane.f32.xlu0 %v876
        %v878 = vpop.xlane.xlu0 %877
        %v879 = vsel %vm848, %v842, 0.0
        %880 = vadd.xlane.f32.xlu0 %v879
        %v881 = vpop.xlane.xlu0 %880
        %v882 = vsel %vm848, %v843, 0.0
        %883 = vadd.xlane.f32.xlu0 %v882
        %v884 = vpop.xlane.xlu0 %883
        %v885 = vsel %vm848, %v844, 0.0
        %886 = vadd.xlane.f32.xlu0 %v885
        %v887 = vpop.xlane.xlu0 %886
        %v888 = vsel %vm848, %v845, 0.0
        %889 = vadd.xlane.f32.xlu0 %v888
        %v890 = vpop.xlane.xlu0 %889
        %v891 = vsel %vm848, %v846, 0.0
        %892 = vadd.xlane.f32.xlu0 %v891
        %v893 = vpop.xlane.xlu0 %892
        %v894 = vsel %vm848, %v847, 0.0
        %895 = vadd.xlane.f32.xlu0 %v894
        %v896 = vpop.xlane.xlu0 %895
        %v897 = vld [vmem:[#allocation2] sm:$0x1]
        %v899 = vlaneseq
        %v900 = vshrl.u32 %v899, 7
        %v901 = vsub.s32 0, %v900
        %v902 = vrot.slane %v897, %v901
        %v904 = vadd.f32 %v851, %v902
        %v905 = vadd.f32 %v854, %v902
        %v906 = vadd.f32 %v857, %v902
        %v907 = vadd.f32 %v860, %v902
        %v908 = vadd.f32 %v863, %v902
        %v909 = vadd.f32 %v866, %v902
        %v910 = vadd.f32 %v869, %v902
        %v911 = vadd.f32 %v872, %v902
        %v912 = vadd.f32 %v875, %v902
        %v913 = vadd.f32 %v878, %v902
        %v914 = vadd.f32 %v881, %v902
        %v915 = vadd.f32 %v884, %v902
        %v916 = vadd.f32 %v887, %v902
        %v917 = vadd.f32 %v890, %v902
        %v918 = vadd.f32 %v893, %v902
        %v919 = vadd.f32 %v896, %v902
        %v920 = vmax.f32 %v904, 0.0
        %v921 = vmax.f32 %v905, 0.0
        %v922 = vmax.f32 %v906, 0.0
        %v923 = vmax.f32 %v907, 0.0
        %v924 = vmax.f32 %v908, 0.0
        %v925 = vmax.f32 %v909, 0.0
        %v926 = vmax.f32 %v910, 0.0
        %v927 = vmax.f32 %v911, 0.0
        %v928 = vmax.f32 %v912, 0.0
        %v929 = vmax.f32 %v913, 0.0
        %v930 = vmax.f32 %v914, 0.0
        %v931 = vmax.f32 %v915, 0.0
        %v932 = vmax.f32 %v916, 0.0
        %v933 = vmax.f32 %v917, 0.0
        %v934 = vmax.f32 %v918, 0.0
        %v935 = vmax.f32 %v919, 0.0
        %v936 = vlaneseq
        %v937 = vand.u32 %v936, 127
        %v938 = vld [vmem:[%s343] sm:$0xff]
        %v939 = vld [vmem:[%s343 + $0x8] sm:$0xff]
        %v940 = vld [vmem:[%s343 + $0x10] sm:$0xff]
        %v941 = vld [vmem:[%s343 + $0x18] sm:$0xff]
        %v942 = vld [vmem:[%s343 + $0x20] sm:$0xff]
        %v943 = vld [vmem:[%s343 + $0x28] sm:$0xff]
        %v944 = vld [vmem:[%s343 + $0x30] sm:$0xff]
        %v945 = vld [vmem:[%s343 + $0x38] sm:$0xff]
        %v946 = vld [vmem:[%s343 + $0x40] sm:$0xff]
        %v947 = vld [vmem:[%s343 + $0x48] sm:$0xff]
        %v948 = vld [vmem:[%s343 + $0x50] sm:$0xff]
        %v949 = vld [vmem:[%s343 + $0x58] sm:$0xff]
        %v950 = vld [vmem:[%s343 + $0x60] sm:$0xff]
        %v951 = vld [vmem:[%s343 + $0x68] sm:$0xff]
        %v952 = vld [vmem:[%s343 + $0x70] sm:$0xff]
        %v953 = vld [vmem:[%s343 + $0x78] sm:$0xff]
        %954 = vset.pattern.permute.xlu0 0
        %955 = vperm.xlu0 %954, %v938
        %v956 = vpop.permute.xlu0 %955
        %957 = vset.pattern.permute.xlu0 0
        %958 = vperm.xlu0 %957, %v939
        %v959 = vpop.permute.xlu0 %958
        %960 = vset.pattern.permute.xlu0 0
        %961 = vperm.xlu0 %960, %v940
        %v962 = vpop.permute.xlu0 %961
        %963 = vset.pattern.permute.xlu0 0
        %964 = vperm.xlu0 %963, %v941
        %v965 = vpop.permute.xlu0 %964
        %966 = vset.pattern.permute.xlu0 0
        %967 = vperm.xlu0 %966, %v942
        %v968 = vpop.permute.xlu0 %967
        %969 = vset.pattern.permute.xlu0 0
        %970 = vperm.xlu0 %969, %v943
        %v971 = vpop.permute.xlu0 %970
        %972 = vset.pattern.permute.xlu0 0
        %973 = vperm.xlu0 %972, %v944
        %v974 = vpop.permute.xlu0 %973
        %975 = vset.pattern.permute.xlu0 0
        %976 = vperm.xlu0 %975, %v945
        %v977 = vpop.permute.xlu0 %976
        %978 = vset.pattern.permute.xlu0 0
        %979 = vperm.xlu0 %978, %v946
        %v980 = vpop.permute.xlu0 %979
        %981 = vset.pattern.permute.xlu0 0
        %982 = vperm.xlu0 %981, %v947
        %v983 = vpop.permute.xlu0 %982
        %984 = vset.pattern.permute.xlu0 0
        %985 = vperm.xlu0 %984, %v948
        %v986 = vpop.permute.xlu0 %985
        %987 = vset.pattern.permute.xlu0 0
        %988 = vperm.xlu0 %987, %v949
        %v989 = vpop.permute.xlu0 %988
        %990 = vset.pattern.permute.xlu0 0
        %991 = vperm.xlu0 %990, %v950
        %v992 = vpop.permute.xlu0 %991
        %993 = vset.pattern.permute.xlu0 0
        %994 = vperm.xlu0 %993, %v951
        %v995 = vpop.permute.xlu0 %994
        %996 = vset.pattern.permute.xlu0 0
        %997 = vperm.xlu0 %996, %v952
        %v998 = vpop.permute.xlu0 %997
        %999 = vset.pattern.permute.xlu0 0
        %1000 = vperm.xlu0 %999, %v953
        %v1001 = vpop.permute.xlu0 %1000
        %vm1002 = vcmp.eq.s32.totalorder %v956, %v937
        %vm1003 = vcmp.eq.s32.totalorder %v959, %v937
        %vm1004 = vcmp.eq.s32.totalorder %v962, %v937
        %vm1005 = vcmp.eq.s32.totalorder %v965, %v937
        %vm1006 = vcmp.eq.s32.totalorder %v968, %v937
        %vm1007 = vcmp.eq.s32.totalorder %v971, %v937
        %vm1008 = vcmp.eq.s32.totalorder %v974, %v937
        %vm1009 = vcmp.eq.s32.totalorder %v977, %v937
        %vm1010 = vcmp.eq.s32.totalorder %v980, %v937
        %vm1011 = vcmp.eq.s32.totalorder %v983, %v937
        %vm1012 = vcmp.eq.s32.totalorder %v986, %v937
        %vm1013 = vcmp.eq.s32.totalorder %v989, %v937
        %vm1014 = vcmp.eq.s32.totalorder %v992, %v937
        %vm1015 = vcmp.eq.s32.totalorder %v995, %v937
        %vm1016 = vcmp.eq.s32.totalorder %v998, %v937
        %vm1017 = vcmp.eq.s32.totalorder %v1001, %v937
        %v1018 = vsel %vm1002, 1, 0
        %v1019 = vsel %vm1003, 1, 0
        %v1020 = vsel %vm1004, 1, 0
        %v1021 = vsel %vm1005, 1, 0
        %v1022 = vsel %vm1006, 1, 0
        %v1023 = vsel %vm1007, 1, 0
        %v1024 = vsel %vm1008, 1, 0
        %v1025 = vsel %vm1009, 1, 0
        %v1026 = vsel %vm1010, 1, 0
        %v1027 = vsel %vm1011, 1, 0
        %v1028 = vsel %vm1012, 1, 0
        %v1029 = vsel %vm1013, 1, 0
        %v1030 = vsel %vm1014, 1, 0
        %v1031 = vsel %vm1015, 1, 0
        %v1032 = vsel %vm1016, 1, 0
        %v1033 = vsel %vm1017, 1, 0
        %v1034 = vcvt.s32.f32 %v1018
        %v1035 = vcvt.s32.f32 %v1019
        %v1036 = vcvt.s32.f32 %v1020
        %v1037 = vcvt.s32.f32 %v1021
        %v1038 = vcvt.s32.f32 %v1022
        %v1039 = vcvt.s32.f32 %v1023
        %v1040 = vcvt.s32.f32 %v1024
        %v1041 = vcvt.s32.f32 %v1025
        %v1042 = vcvt.s32.f32 %v1026
        %v1043 = vcvt.s32.f32 %v1027
        %v1044 = vcvt.s32.f32 %v1028
        %v1045 = vcvt.s32.f32 %v1029
        %v1046 = vcvt.s32.f32 %v1030
        %v1047 = vcvt.s32.f32 %v1031
        %v1048 = vcvt.s32.f32 %v1032
        %v1049 = vcvt.s32.f32 %v1033
        %v1050 = vld [vmem:[#allocation3] sm:$0x1]
        %1052 = vset.pattern.permute.xlu0 0
        %1053 = vperm.xlu0 %1052, %v920
        %v1054 = vpop.permute.xlu0 %1053
        %1057 = vset.pattern.permute.xlu0 0
        %1058 = vperm.xlu0 %1057, %v921
        %v1059 = vpop.permute.xlu0 %1058
        %1062 = vset.pattern.permute.xlu0 0
        %1063 = vperm.xlu0 %1062, %v922
        %v1064 = vpop.permute.xlu0 %1063
        %1067 = vset.pattern.permute.xlu0 0
        %1068 = vperm.xlu0 %1067, %v923
        %v1069 = vpop.permute.xlu0 %1068
        %1072 = vset.pattern.permute.xlu0 0
        %1073 = vperm.xlu0 %1072, %v924
        %v1074 = vpop.permute.xlu0 %1073
        %1077 = vset.pattern.permute.xlu0 0
        %1078 = vperm.xlu0 %1077, %v925
        %v1079 = vpop.permute.xlu0 %1078
        %1082 = vset.pattern.permute.xlu0 0
        %1083 = vperm.xlu0 %1082, %v926
        %v1084 = vpop.permute.xlu0 %1083
        %1087 = vset.pattern.permute.xlu0 0
        %1088 = vperm.xlu0 %1087, %v927
        %v1089 = vpop.permute.xlu0 %1088
        %1092 = vset.pattern.permute.xlu0 0
        %1093 = vperm.xlu0 %1092, %v928
        %v1094 = vpop.permute.xlu0 %1093
        %1097 = vset.pattern.permute.xlu0 0
        %1098 = vperm.xlu0 %1097, %v929
        %v1099 = vpop.permute.xlu0 %1098
        %1102 = vset.pattern.permute.xlu0 0
        %1103 = vperm.xlu0 %1102, %v930
        %v1104 = vpop.permute.xlu0 %1103
        %1107 = vset.pattern.permute.xlu0 0
        %1108 = vperm.xlu0 %1107, %v931
        %v1109 = vpop.permute.xlu0 %1108
        %1112 = vset.pattern.permute.xlu0 0
        %1113 = vperm.xlu0 %1112, %v932
        %v1114 = vpop.permute.xlu0 %1113
        %1117 = vset.pattern.permute.xlu0 0
        %1118 = vperm.xlu0 %1117, %v933
        %v1119 = vpop.permute.xlu0 %1118
        %1122 = vset.pattern.permute.xlu0 0
        %1123 = vperm.xlu0 %1122, %v934
        %v1124 = vpop.permute.xlu0 %1123
        %1127 = vset.pattern.permute.xlu0 0
        %1128 = vperm.xlu0 %1127, %v935
        %v1129 = vpop.permute.xlu0 %1128
        %v1131 = vmul.f32 %v1054, %v1034
        %v1132 = vmul.f32 %v1059, %v1035
        %v1133 = vmul.f32 %v1064, %v1036
        %v1134 = vmul.f32 %v1069, %v1037
        %v1135 = vmul.f32 %v1074, %v1038
        %v1136 = vmul.f32 %v1079, %v1039
        %v1137 = vmul.f32 %v1084, %v1040
        %v1138 = vmul.f32 %v1089, %v1041
        %v1139 = vmul.f32 %v1094, %v1042
        %v1140 = vmul.f32 %v1099, %v1043
        %v1141 = vmul.f32 %v1104, %v1044
        %v1142 = vmul.f32 %v1109, %v1045
        %v1143 = vmul.f32 %v1114, %v1046
        %v1144 = vmul.f32 %v1119, %v1047
        %v1145 = vmul.f32 %v1124, %v1048
        %v1146 = vmul.f32 %v1129, %v1049
        %v1147 = vadd.f32 %v1131, %v1132
        %v1148 = vadd.f32 %v1147, %v1133
        %v1149 = vadd.f32 %v1148, %v1134
        %v1150 = vadd.f32 %v1149, %v1135
        %v1151 = vadd.f32 %v1150, %v1136
        %v1152 = vadd.f32 %v1151, %v1137
        %v1153 = vadd.f32 %v1152, %v1138
        %v1154 = vadd.f32 %v1153, %v1139
        %v1155 = vadd.f32 %v1154, %v1140
        %v1156 = vadd.f32 %v1155, %v1141
        %v1157 = vadd.f32 %v1156, %v1142
        %v1158 = vadd.f32 %v1157, %v1143
        %v1159 = vadd.f32 %v1158, %v1144
        %v1160 = vadd.f32 %v1159, %v1145
        %v1161 = vadd.f32 %v1160, %v1146
        %v1162 = vrot.slane %v1161, 4
        %v1163 = vadd.f32 %v1161, %v1162
        %v1164 = vrot.slane %v1163, 2
        %v1165 = vadd.f32 %v1163, %v1164
        %v1166 = vrot.slane %v1165, 1
        %v1167 = vadd.f32 %v1165, %v1166
        %v1168 = vadd.f32 %v1050, %v1167
        %1169 = vst [vmem:[#allocation3] sm:$0x1] %v1168
        %p1170 = scmp.eq.s32.totalorder %s23, 2
        // Predicated region
        $region61: #{tpu_custom_call.1} parent=55 // pred_check
          %p1171 = pneg %p1170
        $region62: #{tpu_custom_call.1} parent=55 // pred_check_branch
          %1173 = sbr.rel (%p1171) target = $region64
        $region63: #{tpu_custom_call.1} parent=55 // pred_region
          %v1174 = vld [vmem:[#allocation3] sm:$0x1]
          %v1175 = vld [vmem:[%s8] sm:$0x1]
          %v1176 = vmul.f32 %v1174, %v1175
          %1177 = vst [vmem:[#allocation3] sm:$0x1] %v1176
        $region64: #{tpu_custom_call.1} parent=55 // pred_fallthru
          _
        // Predicated region
        $region65: #{tpu_custom_call.1} parent=55 // pred_check
          %p1178 = pneg %p235
        $region66: #{tpu_custom_call.1} parent=55 // pred_check_branch
          %1180 = sbr.rel (%p1178) target = $region68
        $region67: #{tpu_custom_call.1} parent=55 // pred_region
          %s1182 = ssub.s32 16, 16
          %1183 = vsyncadd [#allocation4], %s1182
          %s1185 = sshll.u32 [#allocation3], 4
          %s1186 = int_to_ptr.vmem [resolvable:$true] %s1185
          %1188 = dma.vmem_to_hbm [thread:$0]  %s1186, 16, %s9, [#allocation4]
        $region68: #{tpu_custom_call.1} parent=55 // pred_fallthru
          _
        // Predicated region
        $region69: #{tpu_custom_call.1} parent=55 // pred_check
          %p1189 = pneg %p235
        $region70: #{tpu_custom_call.1} parent=55 // pred_check_branch
          %1191 = sbr.rel (%p1189) target = $region72
        $region71: #{tpu_custom_call.1} parent=55 // pred_region
          %1192 = dma.done [#allocation4], 16
        $region72: #{tpu_custom_call.1} parent=55 // pred_fallthru
          _
      $region56: #{tpu_custom_call.1} parent=5 // pred_fallthru
        _
      %p1193 = scmp.le.s32.totalorder 2, %s18
      // Predicated region
      $region73: #{tpu_custom_call.1} parent=5 // pred_check
        %p1194 = pneg %p1193
      $region74: #{tpu_custom_call.1} parent=5 // pred_check_branch
        %1196 = sbr.rel (%p1194) target = $region76
      $region75: #{tpu_custom_call.1} parent=5 // pred_region
        %s1197 = ssub.s32 %s18, 2
      $region76: #{tpu_custom_call.1} parent=5 // pred_fallthru
        _
    $region6: #{tpu_custom_call.1} parent=1 // loop_footer
      %s22 = sadd.s32 1, %s18
    $region7: #{tpu_custom_call.1} parent=1 // loop_footer_branch
      %17 = sbr.rel target = $region3
    $region8: #{tpu_custom_call.1} parent=1 // loop_exit
      _
    %1198 = vsyncpa [#allocation4], 1
    %s1199 = scalar_lea.sflag [#allocation4], 1
    %1200 = vsyncpa %s1199, 1

</llo_original>
